<compile_context>
chip_gen: v5e
topology: v5e:2x2
jax: 0.10.0
libtpu: 0.0.40
codegen_flags: <defaults>
</compile_context>

<pallas_src>
import functools

import jax
import jax.numpy as jnp
from jax import lax
from jax.experimental import pallas as pl
from jax.experimental.pallas import tpu as pltpu

_LANE = 128      # lane-dense last dim (vreg lane width)
_TILE_M = 2048   # 2048 x 128 x 4B = 1 MiB per f32 buffer


def _uniform_01(idx_u32, seed_u32):
    """Counter-based hash -> float32 uniform in [0, 1). Pure VPU integer ops."""
    h = idx_u32 ^ (seed_u32 * jnp.uint32(0x9E3779B9))
    # murmur3 fmix32 finalizer.
    h = h ^ (h >> jnp.uint32(16))
    h = h * jnp.uint32(0x85EBCA6B)
    h = h ^ (h >> jnp.uint32(13))
    h = h * jnp.uint32(0xC2B2AE35)
    h = h ^ (h >> jnp.uint32(16))
    # Top 24 bits -> [0, 1). Route through int32 so the int->float convert is a
    # plain s32->f32 (safe on all TPU generations and in interpret mode).
    top24 = (h >> jnp.uint32(8)).astype(jnp.int32)
    return top24.astype(jnp.float32) * jnp.float32(1.0 / (1 << 24))


def _soft_dropout_kernel(seed_ref, x_ref, o_ref, *, p, tile_m):
    shape = x_ref.shape  # (tile_m, _LANE), static
    # Global element index -> noise independent of the chosen tiling.
    row = pl.program_id(0) * tile_m + lax.broadcasted_iota(jnp.int32, shape, 0)
    col = lax.broadcasted_iota(jnp.int32, shape, 1)
    idx = (row * shape[1] + col).astype(jnp.uint32)

    seed = seed_ref[0].astype(jnp.uint32)
    u01 = _uniform_01(idx, seed)

    # Map to Uniform(1 - p, 1 + p).
    w = jnp.float32(1.0 - p) + jnp.float32(2.0 * p) * u01

    x = x_ref[...]
    # Multiply in the input dtype (bf16 stays bf16 on v6e/v7x, f32 stays f32).
    o_ref[...] = (x * w.astype(x.dtype)).astype(o_ref.dtype)


def soft_dropout(x, p=0.5, seed=0, training=True):
    """Pallas implementation of SoftDropout.forward (elementwise, any shape)."""
    if p < 0.0 or p > 1.0:
        raise ValueError(
            "soft_dropout probability has to be between 0 and 1, but got {}".format(p)
        )
    if not training:
        return x

    orig_shape = x.shape
    total = x.size

    # Flatten to a lane-dense (M, 128) slab.  Reshape is free; only pad when
    # the element count is ragged.
    pad = (-total) % _LANE
    x_flat = jnp.ravel(x)
    if pad:
        # TODO(synk): handle the ragged tail with an in-kernel masked store
        # instead of this pad+slice round trip.
        x_flat = jnp.pad(x_flat, (0, pad))
    m = (total + pad) // _LANE
    x2d = x_flat.reshape(m, _LANE)

    tile_m = min(_TILE_M, m)           # full-dim block if the slab is small
    grid = (pl.cdiv(m, tile_m),)       # partial last block handled by Pallas

    seed_arr = jnp.asarray([seed], dtype=jnp.int32)
    kernel = functools.partial(_soft_dropout_kernel, p=float(p), tile_m=tile_m)

    compiler_params = None
    if jax.devices()[0].platform == "tpu":
        # Shard the grid across both TensorCores on v7x; harmless elsewhere.
        compiler_params = pltpu.CompilerParams(dimension_semantics=("parallel",))

    out2d = pl.pallas_call(
        kernel,
        out_shape=jax.ShapeDtypeStruct(x2d.shape, x.dtype),
        grid=grid,
        in_specs=[
            pl.BlockSpec(memory_space=pltpu.SMEM),            # seed scalar
            pl.BlockSpec((tile_m, _LANE), lambda i: (i, 0)),   # x tile
        ],
        out_specs=pl.BlockSpec((tile_m, _LANE), lambda i: (i, 0)),
        compiler_params=compiler_params,
    )(seed_arr, x2d)

    out_flat = jnp.ravel(out2d)
    if pad:
        out_flat = out_flat[:total]
    return out_flat.reshape(orig_shape)


if __name__ == "__main__":
    key = jax.random.PRNGKey(0)
    # Small NCHW input consistent with the module's forward.
    x = jax.random.normal(key, (2, 4, 16, 16), dtype=jnp.float32)

    p = 0.5
    y = soft_dropout(x, p=p, seed=0, training=True)
    y = jax.block_until_ready(y)

    # Sanity checks: shape/dtype preserved, per-element ratio within [1-p, 1+p].
    assert y.shape == x.shape and y.dtype == x.dtype
    ratio = jnp.where(jnp.abs(x) > 1e-6, y / x, 1.0)
    assert bool(jnp.all(ratio >= (1.0 - p) - 1e-4))
    assert bool(jnp.all(ratio <= (1.0 + p) + 1e-4))
    # Noise should actually vary per element (not a constant scale).
    assert float(jnp.std(ratio)) > 1e-2

    # Eval mode is a passthrough.
    y_eval = jax.block_until_ready(soft_dropout(x, p=p, training=False))
    assert bool(jnp.all(y_eval == x))

    print("KERNEL_OK")
</pallas_src>

<mosaic_0001>
module attributes {stable_mosaic.version = 11 : i64} {
  func.func @_soft_dropout_kernel(%arg0: i32, %arg1: memref<1xi32, #tpu.memory_space<smem>>, %arg2: memref<16x128xf32, #tpu.memory_space<vmem>>, %arg3: memref<16x128xf32, #tpu.memory_space<vmem>>) attributes {dimension_semantics = [#tpu.dimension_semantics<arbitrary>], iteration_bounds = array<i64: 1>, scalar_prefetch = 0 : i64, scratch_operands = 0 : i64, tpu.core_type = #tpu.core_type<tc>, window_params = [{transform_indices = @transform_0, window_bounds = array<i64: 1>}, {transform_indices = @transform_1, window_bounds = array<i64: 16, 128>}, {transform_indices = @transform_2, window_bounds = array<i64: 16, 128>}]} {
    %c16_i32 = arith.constant 16 : i32
    %0 = arith.muli %arg0, %c16_i32 : i32
    %1 = tpu.iota {dimensions = array<i32: 0>} : vector<16x128xi32>
    %2 = vector.broadcast %0 : i32 to vector<16x128xi32>
    %3 = arith.addi %2, %1 : vector<16x128xi32>
    %4 = tpu.iota {dimensions = array<i32: 1>} : vector<16x128xi32>
    %c128_i32 = arith.constant 128 : i32
    %5 = vector.broadcast %c128_i32 : i32 to vector<16x128xi32>
    %6 = arith.muli %3, %5 : vector<16x128xi32>
    %7 = arith.addi %6, %4 : vector<16x128xi32>
    %c0 = arith.constant 0 : index
    %8 = memref.load %arg1[%c0] : memref<1xi32, #tpu.memory_space<smem>>
    %c-1640531527_i32 = arith.constant -1640531527 : i32
    %9 = arith.muli %8, %c-1640531527_i32 : i32
    %10 = vector.broadcast %9 : i32 to vector<16x128xi32>
    %11 = arith.xori %7, %10 : vector<16x128xi32>
    %c16_i32_0 = arith.constant 16 : i32
    %12 = vector.broadcast %c16_i32_0 : i32 to vector<16x128xi32>
    %13 = arith.shrui %11, %12 : vector<16x128xi32>
    %14 = arith.xori %11, %13 : vector<16x128xi32>
    %c-2048144789_i32 = arith.constant -2048144789 : i32
    %15 = vector.broadcast %c-2048144789_i32 : i32 to vector<16x128xi32>
    %16 = arith.muli %14, %15 : vector<16x128xi32>
    %c13_i32 = arith.constant 13 : i32
    %17 = vector.broadcast %c13_i32 : i32 to vector<16x128xi32>
    %18 = arith.shrui %16, %17 : vector<16x128xi32>
    %19 = arith.xori %16, %18 : vector<16x128xi32>
    %c-1028477387_i32 = arith.constant -1028477387 : i32
    %20 = vector.broadcast %c-1028477387_i32 : i32 to vector<16x128xi32>
    %21 = arith.muli %19, %20 : vector<16x128xi32>
    %c16_i32_1 = arith.constant 16 : i32
    %22 = vector.broadcast %c16_i32_1 : i32 to vector<16x128xi32>
    %23 = arith.shrui %21, %22 : vector<16x128xi32>
    %24 = arith.xori %21, %23 : vector<16x128xi32>
    %c8_i32 = arith.constant 8 : i32
    %25 = vector.broadcast %c8_i32 : i32 to vector<16x128xi32>
    %26 = arith.shrui %24, %25 : vector<16x128xi32>
    %27 = arith.sitofp %26 : vector<16x128xi32> to vector<16x128xf32>
    %cst = arith.constant 5.96046448E-8 : f32
    %28 = vector.broadcast %cst : f32 to vector<16x128xf32>
    %29 = arith.mulf %27, %28 : vector<16x128xf32>
    %cst_2 = arith.constant 1.000000e+00 : f32
    %30 = vector.broadcast %cst_2 : f32 to vector<16x128xf32>
    %31 = arith.mulf %30, %29 : vector<16x128xf32>
    %cst_3 = arith.constant 5.000000e-01 : f32
    %32 = vector.broadcast %cst_3 : f32 to vector<16x128xf32>
    %33 = arith.addf %32, %31 : vector<16x128xf32>
    %c0_4 = arith.constant 0 : index
    %c0_5 = arith.constant 0 : index
    %34 = vector.load %arg2[%c0_4, %c0_5] : memref<16x128xf32, #tpu.memory_space<vmem>>, vector<16x128xf32>
    %35 = arith.mulf %34, %33 : vector<16x128xf32>
    %c0_6 = arith.constant 0 : index
    %c0_7 = arith.constant 0 : index
    %36 = vector.load %arg3[%c0_6, %c0_7] : memref<16x128xf32, #tpu.memory_space<vmem>>, vector<16x128xf32>
    tpu.vector_store %arg3[%c0_6, %c0_7], %35 {strides = array<i32>} : memref<16x128xf32, #tpu.memory_space<vmem>>, vector<16x128xf32>,
    return
  }
  func.func @transform_0(%arg0: i32) -> i32 {
    %c0_i32 = arith.constant 0 : i32
    %c0_i32_0 = arith.constant 0 : i32
    return %c0_i32 : i32
  }
  func.func @transform_1(%arg0: i32) -> (i32, i32) {
    %c0_i32 = arith.constant 0 : i32
    %c0_i32_0 = arith.constant 0 : i32
    return %arg0, %c0_i32 : i32, i32
  }
  func.func @transform_2(%arg0: i32) -> (i32, i32) {
    %c0_i32 = arith.constant 0 : i32
    %c0_i32_0 = arith.constant 0 : i32
    return %arg0, %c0_i32 : i32, i32
  }
}

</mosaic_0001>

<llo_original>
// kernel: tpu_custom_call.1
$region0: #{tpu_custom_call.1}
  #allocation0 [shape = 'u32[]', space=smem, size = 0x4, offset = 0x4, fixed_abs, tag = 'smem constant byte address 0x4 - core index']
  #allocation1 [shape = 'u32[72,128]{1,0:T(1,128)}', space=vmem, size = 0x9000, scoped, tag = 'internal scratch']
  #allocation2 [shape = 's32[1]{0:T(128)S(6)}', space=smem, size = 0x200, scoped, tag = 'scoped memory for tpu_custom_call.1']
  %s0 = inlined_call_operand.<no memory space> [shape: s32[1], index: 0, kind: input, shape index: {}]
  %s1 = inlined_call_operand.hbm [shape: f32[16,128], index: 1, kind: input, shape index: {}]
  %s2 = inlined_call_operand.hbm [shape: f32[16,128], index: 2, kind: output, shape index: {}]
  %s3 = sld [smem:[#allocation0]]
  $region22: #{tpu_custom_call.1} parent=0
    _
  %s5 = ssub.s32 1, %s3
  %s6 = scalar_select 0, %s5, %s3
  %7 = sst [smem:[#allocation2]] %s0
  $region1: #{tpu_custom_call.1} parent=0
    #allocation3 [shape = 'u8[8192]{0}', space=vmem, size = 0x2000, scoped, tag = 'input window, operand 1, single buffered']
    #allocation4 [shape = 's32[1]{0}', space=sflag, size = 0x4, scoped, tag = 'scoped memory for tpu_custom_call.1']
    #allocation5 [shape = 's32[1]{0}', space=sflag, size = 0x4, scoped, tag = 'scoped memory for tpu_custom_call.1']
    #allocation6 [shape = 'u8[8192]{0}', space=vmem, size = 0x2000, scoped, tag = 'output window, operand 0, single buffered']
    %8 = vsyncpa [#allocation4], 0
    %9 = vsyncpa [#allocation5], 0
    // Predicated region
    $region2: #{tpu_custom_call.1} parent=1 // pred_check
      _
    $region3: #{tpu_custom_call.1} parent=1 // pred_check_branch
      %11 = sbr.rel (0) target = $region5
    $region4: #{tpu_custom_call.1} parent=1 // pred_region
      _
    $region5: #{tpu_custom_call.1} parent=1 // pred_fallthru
      _
    // Predicated region
    $region6: #{tpu_custom_call.1} parent=1 // pred_check
      _
    $region7: #{tpu_custom_call.1} parent=1 // pred_check_branch
      %13 = sbr.rel (0) target = $region9
    $region8: #{tpu_custom_call.1} parent=1 // pred_region
      %15 = vsyncadd [#allocation4], 0
      %s16 = sshll.u32 %s1, 4
      %s17 = int_to_ptr.hbm [resolvable:$true] %s16
      %s18 = sshll.u32 [#allocation3], 4
      %s19 = int_to_ptr.vmem [resolvable:$true] %s18
      %24 = dma.hbm_to_vmem [thread:$0]  %s17, 256, %s19, [#allocation4], 128, 128, 8
    $region9: #{tpu_custom_call.1} parent=1 // pred_fallthru
      _
    // Predicated region
    $region10: #{tpu_custom_call.1} parent=1 // pred_check
      _
    $region11: #{tpu_custom_call.1} parent=1 // pred_check_branch
      %26 = sbr.rel (0) target = $region13
    $region12: #{tpu_custom_call.1} parent=1 // pred_region
      %28 = dma.done [#allocation4], 256
    $region13: #{tpu_custom_call.1} parent=1 // pred_fallthru
      _
    %s29 = smul.u32 0, 16
    %v30 = vlaneseq
    %v31 = vshrl.u32 %v30, 7
    %v32 = vadd.s32 %v31, 8
    %v33 = vstv %s29
    %v34 = vadd.s32 %v33, %v31
    %v35 = vadd.s32 %v33, %v32
    %v36 = vlaneseq
    %v37 = vand.u32 %v36, 127
    %v38 = vmul.u32 %v34, 128
    %v39 = vmul.u32 %v35, 128
    %v40 = vadd.s32 %v38, %v37
    %v41 = vadd.s32 %v39, %v37
    %s42 = sld [smem:[#allocation2]]
    %s43 = smul.u32 %s42, 2654435769
    %v44 = vstv %s43
    %v45 = vxor.u32 %v40, %v44
    %v46 = vxor.u32 %v41, %v44
    %v47 = vshrl.u32 %v45, 16
    %v48 = vshrl.u32 %v46, 16
    %v49 = vxor.u32 %v45, %v47
    %v50 = vxor.u32 %v46, %v48
    %v51 = vmul.u32 %v49, 2246822507
    %v52 = vmul.u32 %v50, 2246822507
    %v53 = vshrl.u32 %v51, 13
    %v54 = vshrl.u32 %v52, 13
    %v55 = vxor.u32 %v51, %v53
    %v56 = vxor.u32 %v52, %v54
    %v57 = vmul.u32 %v55, 3266489909
    %v58 = vmul.u32 %v56, 3266489909
    %v59 = vshrl.u32 %v57, 16
    %v60 = vshrl.u32 %v58, 16
    %v61 = vxor.u32 %v57, %v59
    %v62 = vxor.u32 %v58, %v60
    %v63 = vshrl.u32 %v61, 8
    %v64 = vshrl.u32 %v62, 8
    %v65 = vcvt.s32.f32 %v63
    %v66 = vcvt.s32.f32 %v64
    %v67 = vmul.f32 %v65, 5.9604645e-08
    %v68 = vmul.f32 %v66, 5.9604645e-08
    %v69 = vadd.f32 %v67, 0.5
    %v70 = vadd.f32 %v68, 0.5
    %v71 = vld [vmem:[#allocation3] sm:$0xff]
    %v72 = vld [vmem:[#allocation3 + $0x8] sm:$0xff]
    %v73 = vmul.f32 %v71, %v69
    %v74 = vmul.f32 %v72, %v70
    %75 = vst [vmem:[#allocation6] sm:$0xff] %v73
    %76 = vst [vmem:[#allocation6 + $0x8] sm:$0xff] %v74
    // Predicated region
    $region14: #{tpu_custom_call.1} parent=1 // pred_check
      _
    $region15: #{tpu_custom_call.1} parent=1 // pred_check_branch
      %78 = sbr.rel (0) target = $region17
    $region16: #{tpu_custom_call.1} parent=1 // pred_region
      %80 = vsyncadd [#allocation5], 0
      %s81 = sshll.u32 [#allocation6], 4
      %s82 = int_to_ptr.vmem [resolvable:$true] %s81
      %s83 = sshll.u32 %s2, 4
      %s84 = int_to_ptr.hbm [resolvable:$true] %s83
      %89 = dma.vmem_to_hbm [thread:$0]  %s82, 256, %s84, [#allocation5], 128, 128, 8
    $region17: #{tpu_custom_call.1} parent=1 // pred_fallthru
      _
    // Predicated region
    $region18: #{tpu_custom_call.1} parent=1 // pred_check
      _
    $region19: #{tpu_custom_call.1} parent=1 // pred_check_branch
      %91 = sbr.rel (0) target = $region21
    $region20: #{tpu_custom_call.1} parent=1 // pred_region
      %93 = dma.done [#allocation5], 256
    $region21: #{tpu_custom_call.1} parent=1 // pred_fallthru
      _
    %94 = vsyncpa [#allocation4], 1
    %95 = vsyncpa [#allocation5], 1

</llo_original>
